<compile_context>
chip_gen: v7x
topology: tpu7x:2x2x1
jax: 0.10.0
libtpu: 0.0.40
codegen_flags: <defaults>
</compile_context>

<pallas_src>
import functools

import jax
import jax.numpy as jnp
from jax.experimental import pallas as pl
from jax.experimental.pallas import tpu as pltpu


def _mlp_kernel(x_ref, w1_ref, b1_ref, w2_ref, b2_ref, o_ref, *,
                act_dtype, exact_gelu):
    # x_ref:  (TM, Cin_p)   token tile, already in compute dtype (bf16)
    # w1_ref: (Cin_p, H_p)  fc1 weight, (in, out) layout, compute dtype
    # b1_ref: (1, H_p)      act_dtype
    # w2_ref: (H_p, Cout_p) compute dtype
    # b2_ref: (1, Cout_p)   f32
    # o_ref:  (TM, Cout_p)
    h = jnp.dot(x_ref[...], w1_ref[...], preferred_element_type=jnp.float32)
    h = h.astype(act_dtype) + b1_ref[...]
    if exact_gelu:
        # torch.nn.GELU default (erf) — long f32 polynomial on the VALU slot.
        hf = h.astype(jnp.float32)
        h = 0.5 * hf * (1.0 + jax.lax.erf(hf * 0.7071067811865476))
    else:
        # tanh-approx GELU: tanh lowers to the EUP (separate VLIW slot), so it
        # is nearly free vs. the saturating VALU; stays in act_dtype (bf16 on
        # v6e/v7x packs 2 elems/lane -> ~2x on the binding slot).
        h = 0.5 * h * (1.0 + jnp.tanh(
            0.7978845608028654 * (h + 0.044715 * (h * h * h))))
    h = h.astype(w2_ref.dtype)
    o = jnp.dot(h, w2_ref[...], preferred_element_type=jnp.float32) + b2_ref[...]
    o_ref[...] = o.astype(o_ref.dtype)


def _round_up(v, m):
    return (v + m - 1) // m * m


def _device_kind():
    try:
        return jax.devices()[0].device_kind.lower()
    except Exception:
        return ""


def mlp_pallas(x, w1, b1, w2, b2, *, tm=None, compute_dtype=jnp.bfloat16,
               out_dtype=None, exact_gelu=False):
    """x: (B, N, Cin); w1: (Cin, H); b1: (H,); w2: (H, Cout); b2: (Cout,)."""
    B, N, Cin = x.shape
    H = w1.shape[1]
    Cout = w2.shape[1]
    T = B * N
    out_dtype = out_dtype or x.dtype  # pass jnp.bfloat16 to halve writeback DMA

    kind = _device_kind()
    is_v5 = "v5" in kind
    is_v7 = "v7" in kind

    # v5e has no bf16 VPU/EUP -> activation epilogue in f32 there.
    act_dtype = jnp.float32 if (is_v5 or jnp.dtype(compute_dtype) == jnp.float32) \
        else jnp.dtype(compute_dtype)

    # Lane-dense channel dims (multiples of 128). Zero padding keeps the math
    # exact: padded input channels hit zero weight rows, padded hidden units
    # get zero weights/bias (GELU(0)=0) and zero rows in w2, padded output
    # channels are sliced off below.
    Cin_p = _round_up(Cin, 128)
    H_p = _round_up(H, 128)
    Cout_p = _round_up(Cout, 128)

    x_isz = jnp.dtype(compute_dtype).itemsize
    w_isz = jnp.dtype(compute_dtype).itemsize
    o_isz = jnp.dtype(out_dtype).itemsize
    a_isz = jnp.dtype(act_dtype).itemsize

    # Token tile: bigger on the 128 MiB-VMEM chips (amortize ~0.35 us/step and
    # approach the HBM roofline); keep 256 on v7x (64 MiB VMEM).
    if tm is None:
        tm = 256 if is_v7 else 512
    TM = min(tm, _round_up(T, 8))
    # Megacore: keep >= 2 token tiles so both TensorCores get work.
    if pl.cdiv(T, TM) < 2 and T > 8:
        TM = _round_up(pl.cdiv(T, 2), 8)

    # VMEM accounting (honest, no double multiplication): resident weights +
    # biases are double-buffered by the pipeline, streamed x/out tiles are
    # double-buffered, plus the (TM, H_p) f32 intermediate + its act copy.
    vmem_budget = (48 << 20) if is_v7 else (100 << 20)

    def vmem_bytes(tm_):
        weights = 2 * (Cin_p * H_p + H_p * Cout_p) * w_isz
        biases = 2 * (H_p * a_isz + Cout_p * 4)
        stream = 2 * tm_ * Cin_p * x_isz + 2 * tm_ * Cout_p * o_isz
        interm = tm_ * H_p * (4 + a_isz)
        return weights + biases + stream + interm

    while TM > 8 and vmem_bytes(TM) + (8 << 20) > vmem_budget:
        TM = _round_up(TM // 2, 8)
    vmem_limit = int(min(vmem_budget, vmem_bytes(TM) + (8 << 20)))

    grid = (pl.cdiv(T, TM),)  # partial last tile: OOB rows never cross tokens

    # Cast x to the compute dtype in the wrapper (folded into the pad copy):
    # halves x DMA bytes and removes a per-tile f32->bf16 cast in the kernel.
    x2d = x.reshape(T, Cin).astype(compute_dtype)
    if Cin_p != Cin:
        x2d = jnp.pad(x2d, ((0, 0), (0, Cin_p - Cin)))
    w1_p = jnp.pad(w1, ((0, Cin_p - Cin), (0, H_p - H))).astype(compute_dtype)
    b1_p = jnp.pad(b1, (0, H_p - H)).reshape(1, H_p).astype(act_dtype)
    w2_p = jnp.pad(w2, ((0, H_p - H), (0, Cout_p - Cout))).astype(compute_dtype)
    b2_p = jnp.pad(b2, (0, Cout_p - Cout)).reshape(1, Cout_p).astype(jnp.float32)

    # Advisory cost estimate for XLA's scheduler.
    cost = pl.CostEstimate(
        flops=2 * T * Cin_p * H_p + 2 * T * H_p * Cout_p,
        transcendentals=T * H_p,
        bytes_accessed=(T * Cin_p * x_isz + T * Cout_p * o_isz
                        + (Cin_p * H_p + H_p * Cout_p) * w_isz
                        + H_p * a_isz + Cout_p * 4),
    )

    kernel = functools.partial(_mlp_kernel, act_dtype=act_dtype,
                               exact_gelu=exact_gelu)

    out2d = pl.pallas_call(
        kernel,
        out_shape=jax.ShapeDtypeStruct((T, Cout_p), out_dtype),
        grid_spec=pltpu.PrefetchScalarGridSpec(
            num_scalar_prefetch=0,
            grid=grid,
            in_specs=[
                pl.BlockSpec((TM, Cin_p), lambda i: (i, 0)),     # streamed token tiles
                pl.BlockSpec((Cin_p, H_p), lambda i: (0, 0)),    # resident fc1 weight
                pl.BlockSpec((1, H_p), lambda i: (0, 0)),        # resident fc1 bias
                pl.BlockSpec((H_p, Cout_p), lambda i: (0, 0)),   # resident fc2 weight
                pl.BlockSpec((1, Cout_p), lambda i: (0, 0)),     # resident fc2 bias
            ],
            out_specs=pl.BlockSpec((TM, Cout_p), lambda i: (i, 0)),
        ),
        compiler_params=pltpu.CompilerParams(
            dimension_semantics=("parallel",),   # independent token tiles -> megacore
            vmem_limit_bytes=vmem_limit,
        ),
        cost_estimate=cost,
    )(x2d, w1_p, b1_p, w2_p, b2_p)

    out2d = out2d[:, :Cout] if Cout_p != Cout else out2d
    return out2d.reshape(B, N, Cout)


def mlp_reference(x, w1, b1, w2, b2):
    h = jnp.einsum("bnc,ch->bnh", x, w1) + b1
    h = jax.nn.gelu(h, approximate=False)
    return jnp.einsum("bnh,ho->bno", h, w2) + b2


def mlp(x, w1, b1, w2, b2, **kw):
    # For tiny channel widths (<64) the 128-lane padding wastes >85% of the
    # MXU/DMA work — a fused XLA einsum wins there; use the kernel otherwise.
    if min(w1.shape[0], w1.shape[1], w2.shape[1]) < 64:
        return mlp_reference(x, w1, b1, w2, b2)
    return mlp_pallas(x, w1, b1, w2, b2, **kw)


if __name__ == "__main__":
    key = jax.random.PRNGKey(0)
    B, N = 2, 8                  # batch, sequence length
    in_features = 16
    hidden_features = 32
    out_features = 16

    k_x, k_w1, k_b1, k_w2, k_b2 = jax.random.split(key, 5)
    x = jax.random.normal(k_x, (B, N, in_features), dtype=jnp.float32)

    # PyTorch nn.Linear stores weight as (out, in); kernel uses (in, out) layout.
    w1 = jax.random.normal(k_w1, (in_features, hidden_features), jnp.float32) * 0.05
    b1 = jax.random.normal(k_b1, (hidden_features,), jnp.float32) * 0.05
    w2 = jax.random.normal(k_w2, (hidden_features, out_features), jnp.float32) * 0.05
    b2 = jax.random.normal(k_b2, (out_features,), jnp.float32) * 0.05

    # Call the Pallas path directly to exercise the kernel (production code
    # would go through mlp(), which dispatches tiny widths to XLA).
    fwd = jax.jit(mlp_pallas)
    out = fwd(x, w1, b1, w2, b2)
    jax.block_until_ready(out)

    ref = mlp_reference(x, w1, b1, w2, b2)
    assert out.shape == (B, N, out_features)
    # bf16 operands/epilogue + tanh-approx GELU (f32 accumulation) -> loosened
    # tolerance vs the exact-erf f32 reference.
    assert jnp.allclose(out, ref, atol=2e-2, rtol=2e-2), "mismatch vs reference"

    print("KERNEL_OK")
</pallas_src>

<mosaic_0001>
module attributes {stable_mosaic.version = 11 : i64} {
  func.func @_mlp_kernel(%arg0: i32, %arg1: memref<8x128xbf16, #tpu.memory_space<vmem>>, %arg2: memref<128x128xbf16, #tpu.memory_space<vmem>>, %arg3: memref<1x128xbf16, #tpu.memory_space<vmem>>, %arg4: memref<128x128xbf16, #tpu.memory_space<vmem>>, %arg5: memref<1x128xf32, #tpu.memory_space<vmem>>, %arg6: memref<8x128xf32, #tpu.memory_space<vmem>>) attributes {dimension_semantics = [#tpu.dimension_semantics<parallel>], iteration_bounds = array<i64: 2>, scalar_prefetch = 0 : i64, scratch_operands = 0 : i64, tpu.core_type = #tpu.core_type<tc>, window_params = [{transform_indices = @transform_0, window_bounds = array<i64: 8, 128>}, {pipeline_mode = #tpu.pipeline_mode<synchronous>, transform_indices = @transform_1, window_bounds = array<i64: 128, 128>}, {pipeline_mode = #tpu.pipeline_mode<synchronous>, transform_indices = @transform_2, window_bounds = array<i64: 1, 128>}, {pipeline_mode = #tpu.pipeline_mode<synchronous>, transform_indices = @transform_3, window_bounds = array<i64: 128, 128>}, {pipeline_mode = #tpu.pipeline_mode<synchronous>, transform_indices = @transform_4, window_bounds = array<i64: 1, 128>}, {transform_indices = @transform_5, window_bounds = array<i64: 8, 128>}]} {
    %c0 = arith.constant 0 : index
    %c0_0 = arith.constant 0 : index
    %0 = vector.load %arg1[%c0, %c0_0] : memref<8x128xbf16, #tpu.memory_space<vmem>>, vector<8x128xbf16>
    %c0_1 = arith.constant 0 : index
    %c0_2 = arith.constant 0 : index
    %1 = vector.load %arg2[%c0_1, %c0_2] : memref<128x128xbf16, #tpu.memory_space<vmem>>, vector<128x128xbf16>
    %cst = arith.constant dense<0.000000e+00> : vector<8x128xf32>
    %2 = tpu.matmul %0, %1, %cst {dimension_numbers = #tpu.dot_dimension_numbers<[1], [0], [0], [1], [0, 0, 1, 1], [], []>} : vector<8x128xbf16>, vector<128x128xbf16>, vector<8x128xf32> -> vector<8x128xf32>
    %3 = arith.truncf %2 : vector<8x128xf32> to vector<8x128xbf16>
    %c0_3 = arith.constant 0 : index
    %c0_4 = arith.constant 0 : index
    %4 = vector.load %arg3[%c0_3, %c0_4] : memref<1x128xbf16, #tpu.memory_space<vmem>>, vector<1x128xbf16>
    %5 = vector.broadcast %4 : vector<1x128xbf16> to vector<8x128xbf16>
    %6 = arith.addf %3, %5 : vector<8x128xbf16>
    %cst_5 = arith.constant 5.000000e-01 : bf16
    %7 = vector.broadcast %cst_5 : bf16 to vector<8x128xbf16>
    %8 = arith.mulf %7, %6 : vector<8x128xbf16>
    %9 = arith.mulf %6, %6 : vector<8x128xbf16>
    %10 = arith.mulf %9, %6 : vector<8x128xbf16>
    %cst_6 = arith.constant 4.467770e-02 : bf16
    %11 = vector.broadcast %cst_6 : bf16 to vector<8x128xbf16>
    %12 = arith.mulf %11, %10 : vector<8x128xbf16>
    %13 = arith.addf %6, %12 : vector<8x128xbf16>
    %cst_7 = arith.constant 7.968750e-01 : bf16
    %14 = vector.broadcast %cst_7 : bf16 to vector<8x128xbf16>
    %15 = arith.mulf %14, %13 : vector<8x128xbf16>
    %16 = math.tanh %15 : vector<8x128xbf16>
    %cst_8 = arith.constant 1.000000e+00 : bf16
    %17 = vector.broadcast %cst_8 : bf16 to vector<8x128xbf16>
    %18 = arith.addf %17, %16 : vector<8x128xbf16>
    %19 = arith.mulf %8, %18 : vector<8x128xbf16>
    %c0_9 = arith.constant 0 : index
    %c0_10 = arith.constant 0 : index
    %20 = vector.load %arg4[%c0_9, %c0_10] : memref<128x128xbf16, #tpu.memory_space<vmem>>, vector<128x128xbf16>
    %cst_11 = arith.constant dense<0.000000e+00> : vector<8x128xf32>
    %21 = tpu.matmul %19, %20, %cst_11 {dimension_numbers = #tpu.dot_dimension_numbers<[1], [0], [0], [1], [0, 0, 1, 1], [], []>} : vector<8x128xbf16>, vector<128x128xbf16>, vector<8x128xf32> -> vector<8x128xf32>
    %c0_12 = arith.constant 0 : index
    %c0_13 = arith.constant 0 : index
    %22 = vector.load %arg5[%c0_12, %c0_13] : memref<1x128xf32, #tpu.memory_space<vmem>>, vector<1x128xf32>
    %23 = vector.broadcast %22 : vector<1x128xf32> to vector<8x128xf32>
    %24 = arith.addf %21, %23 : vector<8x128xf32>
    %c0_14 = arith.constant 0 : index
    %c0_15 = arith.constant 0 : index
    %25 = vector.load %arg6[%c0_14, %c0_15] : memref<8x128xf32, #tpu.memory_space<vmem>>, vector<8x128xf32>
    tpu.vector_store %arg6[%c0_14, %c0_15], %24 {strides = array<i32>} : memref<8x128xf32, #tpu.memory_space<vmem>>, vector<8x128xf32>,
    return
  }
  func.func @transform_0(%arg0: i32) -> (i32, i32) {
    %c0_i32 = arith.constant 0 : i32
    %c0_i32_0 = arith.constant 0 : i32
    return %arg0, %c0_i32 : i32, i32
  }
  func.func @transform_1(%arg0: i32) -> (i32, i32) {
    %c0_i32 = arith.constant 0 : i32
    %c0_i32_0 = arith.constant 0 : i32
    %c0_i32_1 = arith.constant 0 : i32
    return %c0_i32, %c0_i32_0 : i32, i32
  }
  func.func @transform_2(%arg0: i32) -> (i32, i32) {
    %c0_i32 = arith.constant 0 : i32
    %c0_i32_0 = arith.constant 0 : i32
    %c0_i32_1 = arith.constant 0 : i32
    return %c0_i32, %c0_i32_0 : i32, i32
  }
  func.func @transform_3(%arg0: i32) -> (i32, i32) {
    %c0_i32 = arith.constant 0 : i32
    %c0_i32_0 = arith.constant 0 : i32
    %c0_i32_1 = arith.constant 0 : i32
    return %c0_i32, %c0_i32_0 : i32, i32
  }
  func.func @transform_4(%arg0: i32) -> (i32, i32) {
    %c0_i32 = arith.constant 0 : i32
    %c0_i32_0 = arith.constant 0 : i32
    %c0_i32_1 = arith.constant 0 : i32
    return %c0_i32, %c0_i32_0 : i32, i32
  }
  func.func @transform_5(%arg0: i32) -> (i32, i32) {
    %c0_i32 = arith.constant 0 : i32
    %c0_i32_0 = arith.constant 0 : i32
    return %arg0, %c0_i32 : i32, i32
  }
}

</mosaic_0001>

<llo_original>
// kernel: mlp_pallas.1
$region0: #{mlp_pallas.1}
  #allocation0 [shape = 'u32[]', space=smem, size = 0x4, offset = 0x4, fixed_abs, tag = 'smem constant byte address 0x4 - core index']
  #allocation1 [shape = 'u32[144,128]{1,0:T(1,128)}', space=vmem, size = 0x12000, scoped, tag = 'internal scratch']
  %s0 = inlined_call_operand.vmem [shape: bf16[16,128], index: 0, kind: input, shape index: {}]
  %s1 = inlined_call_operand.vmem [shape: bf16[128,128], index: 1, kind: input, shape index: {}]
  %s2 = inlined_call_operand.vmem [shape: bf16[1,128], index: 2, kind: input, shape index: {}]
  %s3 = inlined_call_operand.vmem [shape: bf16[128,128], index: 3, kind: input, shape index: {}]
  %s4 = inlined_call_operand.vmem [shape: f32[1,128], index: 4, kind: input, shape index: {}]
  %s5 = inlined_call_operand.vmem [shape: f32[16,128], index: 5, kind: output, shape index: {}]
  %s6 = sld [smem:[#allocation0]]
  $region53: #{mlp_pallas.1} parent=0
    _
  %s8 = ssub.s32 1, %s6
  %s9 = scalar_select 0, %s8, %s6
  loop: start=0, step=1, limit=4
  $region2: #{mlp_pallas.1} parent=0 // loop_pre_header
    _
  $region3: #{mlp_pallas.1} parent=0 // loop_header
    %s11 = sphi 0, %s15
    %p12 = scmp.ge.s32.totalorder %s11, 4
    %s21 = sphi 0, %s23
    %s24 = sphi 0, %s21
    %s25 = sphi 0, %s24
    %s41 = sphi 0, %s25
    %s45 = sphi 0, %s45
    %s47 = sphi 0, %s45
    %s48 = sphi 0, %s47
    %s62 = sphi 0, %s48
    %s66 = sphi 0, %s66
    %s68 = sphi 0, %s66
    %s69 = sphi 0, %s68
    %s83 = sphi 0, %s69
    %s87 = sphi 0, %s87
    %s89 = sphi 0, %s87
    %s90 = sphi 0, %s89
    %s104 = sphi 0, %s90
    %s108 = sphi 0, %s108
    %s110 = sphi 0, %s108
    %s111 = sphi 0, %s110
    %s125 = sphi 0, %s111
    %s131 = sphi 0, %s133
    %s134 = sphi 0, %s131
    %s135 = sphi 0, %s134
    %s151 = sphi 0, %s135
  $region4: #{mlp_pallas.1} parent=0 // loop_header_branch
    %14 = sbr.rel (%p12) target = $region8
  $region5: #{mlp_pallas.1} parent=0 // loop_body
    %s16 = ssub.s32 %s11, 1
    %s17 = ssub.s32 %s11, 2
    %s18 = sadd.s32 %s11, 1
    %s19 = ssub.s32 %s11, %s18
    %p20 = scmp.eq.s32.totalorder %s19, 0
    %s22 = sadd.s32 %s21, 1
    %s23 = scalar_select %p20, %s21, %s22
    %p26 = pneg %p20
    %p27 = scmp.eq.s32.totalorder %s11, 1
    %p28 = por %p26, %p27
    %p29 = scmp.ne.s32.totalorder %s21, %s24
    %p30 = scmp.eq.s32.totalorder %s11, 0
    %p31 = por %p29, %p30
    %p32 = scmp.ne.s32.totalorder %s21, %s24
    %p33 = scmp.eq.s32.totalorder %s16, 1
    %p34 = por %p32, %p33
    %p35 = scmp.ne.s32.totalorder %s24, %s25
    %p36 = scmp.eq.s32.totalorder %s16, 0
    %p37 = por %p35, %p36
    %p38 = scmp.ne.s32.totalorder %s24, %s25
    %p39 = scmp.eq.s32.totalorder %s17, 1
    %p40 = por %p38, %p39
    %p42 = scmp.ne.s32.totalorder %s25, %s41
    %p43 = scmp.eq.s32.totalorder %s17, 0
    %p44 = por %p42, %p43
    %s46 = sadd.s32 %s45, 1
    %p49 = scmp.eq.s32.totalorder %s11, 1
    %p50 = scmp.ne.s32.totalorder %s45, %s47
    %p51 = scmp.eq.s32.totalorder %s11, 0
    %p52 = por %p50, %p51
    %p53 = scmp.ne.s32.totalorder %s45, %s47
    %p54 = scmp.eq.s32.totalorder %s16, 1
    %p55 = por %p53, %p54
    %p56 = scmp.ne.s32.totalorder %s47, %s48
    %p57 = scmp.eq.s32.totalorder %s16, 0
    %p58 = por %p56, %p57
    %p59 = scmp.ne.s32.totalorder %s47, %s48
    %p60 = scmp.eq.s32.totalorder %s17, 1
    %p61 = por %p59, %p60
    %p63 = scmp.ne.s32.totalorder %s48, %s62
    %p64 = scmp.eq.s32.totalorder %s17, 0
    %p65 = por %p63, %p64
    %s67 = sadd.s32 %s66, 1
    %p70 = scmp.eq.s32.totalorder %s11, 1
    %p71 = scmp.ne.s32.totalorder %s66, %s68
    %p72 = scmp.eq.s32.totalorder %s11, 0
    %p73 = por %p71, %p72
    %p74 = scmp.ne.s32.totalorder %s66, %s68
    %p75 = scmp.eq.s32.totalorder %s16, 1
    %p76 = por %p74, %p75
    %p77 = scmp.ne.s32.totalorder %s68, %s69
    %p78 = scmp.eq.s32.totalorder %s16, 0
    %p79 = por %p77, %p78
    %p80 = scmp.ne.s32.totalorder %s68, %s69
    %p81 = scmp.eq.s32.totalorder %s17, 1
    %p82 = por %p80, %p81
    %p84 = scmp.ne.s32.totalorder %s69, %s83
    %p85 = scmp.eq.s32.totalorder %s17, 0
    %p86 = por %p84, %p85
    %s88 = sadd.s32 %s87, 1
    %p91 = scmp.eq.s32.totalorder %s11, 1
    %p92 = scmp.ne.s32.totalorder %s87, %s89
    %p93 = scmp.eq.s32.totalorder %s11, 0
    %p94 = por %p92, %p93
    %p95 = scmp.ne.s32.totalorder %s87, %s89
    %p96 = scmp.eq.s32.totalorder %s16, 1
    %p97 = por %p95, %p96
    %p98 = scmp.ne.s32.totalorder %s89, %s90
    %p99 = scmp.eq.s32.totalorder %s16, 0
    %p100 = por %p98, %p99
    %p101 = scmp.ne.s32.totalorder %s89, %s90
    %p102 = scmp.eq.s32.totalorder %s17, 1
    %p103 = por %p101, %p102
    %p105 = scmp.ne.s32.totalorder %s90, %s104
    %p106 = scmp.eq.s32.totalorder %s17, 0
    %p107 = por %p105, %p106
    %s109 = sadd.s32 %s108, 1
    %p112 = scmp.eq.s32.totalorder %s11, 1
    %p113 = scmp.ne.s32.totalorder %s108, %s110
    %p114 = scmp.eq.s32.totalorder %s11, 0
    %p115 = por %p113, %p114
    %p116 = scmp.ne.s32.totalorder %s108, %s110
    %p117 = scmp.eq.s32.totalorder %s16, 1
    %p118 = por %p116, %p117
    %p119 = scmp.ne.s32.totalorder %s110, %s111
    %p120 = scmp.eq.s32.totalorder %s16, 0
    %p121 = por %p119, %p120
    %p122 = scmp.ne.s32.totalorder %s110, %s111
    %p123 = scmp.eq.s32.totalorder %s17, 1
    %p124 = por %p122, %p123
    %p126 = scmp.ne.s32.totalorder %s111, %s125
    %p127 = scmp.eq.s32.totalorder %s17, 0
    %p128 = por %p126, %p127
    %s129 = ssub.s32 %s11, %s18
    %p130 = scmp.eq.s32.totalorder %s129, 0
    %s132 = sadd.s32 %s131, 1
    %s133 = scalar_select %p130, %s131, %s132
    %p136 = pneg %p130
    %p137 = scmp.eq.s32.totalorder %s11, 1
    %p138 = por %p136, %p137
    %p139 = scmp.ne.s32.totalorder %s131, %s134
    %p140 = scmp.eq.s32.totalorder %s11, 0
    %p141 = por %p139, %p140
    %p142 = scmp.ne.s32.totalorder %s131, %s134
    %p143 = scmp.eq.s32.totalorder %s16, 1
    %p144 = por %p142, %p143
    %p145 = scmp.ne.s32.totalorder %s134, %s135
    %p146 = scmp.eq.s32.totalorder %s16, 0
    %p147 = por %p145, %p146
    %p148 = scmp.ne.s32.totalorder %s134, %s135
    %p149 = scmp.eq.s32.totalorder %s17, 1
    %p150 = por %p148, %p149
    %p152 = scmp.ne.s32.totalorder %s135, %s151
    %p153 = scmp.eq.s32.totalorder %s17, 0
    %p154 = por %p152, %p153
    %p155 = scmp.le.s32.totalorder 1, %s11
    %p156 = scmp.lt.s32.totalorder %s11, 3
    %p157 = pnand %p155, %p156
    %p158 = pneg %p157
    // Predicated region
    $region9: #{mlp_pallas.1} parent=5 // pred_check
      _
    $region10: #{mlp_pallas.1} parent=5 // pred_check_branch
      %160 = sbr.rel (%p157) target = $region12
    $region11: #{mlp_pallas.1} parent=5 // pred_region
      %s161 = ssub.s32 %s11, 1
      // Predicated region
      $region13: #{mlp_pallas.1} parent=11 // pred_check
        %p162 = pneg %p58
      $region14: #{mlp_pallas.1} parent=11 // pred_check_branch
        %164 = sbr.rel (%p162) target = $region16
      $region15: #{mlp_pallas.1} parent=11 // pred_region
        _
      $region16: #{mlp_pallas.1} parent=11 // pred_fallthru
        _
      // Predicated region
      $region17: #{mlp_pallas.1} parent=11 // pred_check
        %p165 = pneg %p79
      $region18: #{mlp_pallas.1} parent=11 // pred_check_branch
        %167 = sbr.rel (%p165) target = $region20
      $region19: #{mlp_pallas.1} parent=11 // pred_region
        _
      $region20: #{mlp_pallas.1} parent=11 // pred_fallthru
        _
      // Predicated region
      $region21: #{mlp_pallas.1} parent=11 // pred_check
        %p168 = pneg %p100
      $region22: #{mlp_pallas.1} parent=11 // pred_check_branch
        %170 = sbr.rel (%p168) target = $region24
      $region23: #{mlp_pallas.1} parent=11 // pred_region
        _
      $region24: #{mlp_pallas.1} parent=11 // pred_fallthru
        _
      // Predicated region
      $region25: #{mlp_pallas.1} parent=11 // pred_check
        %p171 = pneg %p121
      $region26: #{mlp_pallas.1} parent=11 // pred_check_branch
        %173 = sbr.rel (%p171) target = $region28
      $region27: #{mlp_pallas.1} parent=11 // pred_region
        _
      $region28: #{mlp_pallas.1} parent=11 // pred_fallthru
        _
    $region12: #{mlp_pallas.1} parent=5 // pred_fallthru
      _
    %p174 = scmp.lt.s32.totalorder %s11, 2
    // Predicated region
    $region29: #{mlp_pallas.1} parent=5 // pred_check
      %p175 = pneg %p174
    $region30: #{mlp_pallas.1} parent=5 // pred_check_branch
      %177 = sbr.rel (%p175) target = $region32
    $region31: #{mlp_pallas.1} parent=5 // pred_region
      // Predicated region
      $region33: #{mlp_pallas.1} parent=31 // pred_check
        %p178 = pneg %p31
      $region34: #{mlp_pallas.1} parent=31 // pred_check_branch
        %180 = sbr.rel (%p178) target = $region36
      $region35: #{mlp_pallas.1} parent=31 // pred_region
        %p181 = scmp.lt.s32.totalorder %s11, 1
        %s182 = scalar_select %p181, %s11, 1
        %s183 = smul.addr %s182, 4
        %s184 = scalar_lea.vmem %s0, %s183
      $region36: #{mlp_pallas.1} parent=31 // pred_fallthru
        _
    $region32: #{mlp_pallas.1} parent=5 // pred_fallthru
      _
    %p185 = scmp.le.s32.totalorder 1, %s11
    %p186 = scmp.lt.s32.totalorder %s11, 3
    %p187 = pnand %p185, %p186
    %p188 = pneg %p187
    // Predicated region
    $region37: #{mlp_pallas.1} parent=5 // pred_check
      _
    $region38: #{mlp_pallas.1} parent=5 // pred_check_branch
      %190 = sbr.rel (%p187) target = $region40
    $region39: #{mlp_pallas.1} parent=5 // pred_region
      %s191 = ssub.s32 %s11, 1
      %p192 = scmp.lt.s32.totalorder %s16, 1
      %s193 = scalar_select %p192, %s16, 1
      %s194 = smul.addr %s193, 4
      %s195 = scalar_lea.vmem %s0, %s194
      %p196 = pneg %p37
      %p197 = pneg %p34
      %p198 = pneg %p58
      %p199 = pneg %p55
      %p200 = pneg %p79
      %p201 = pneg %p76
      %p202 = pneg %p100
      %p203 = pneg %p97
      %p204 = pneg %p121
      %p205 = pneg %p118
      %p206 = pneg %p147
      %p207 = pneg %p144
      %p208 = scmp.lt.s32.totalorder %s16, 1
      %s209 = scalar_select %p208, %s16, 1
      %s210 = smul.addr %s209, 8
      %s211 = scalar_lea.vmem %s5, %s210
      %p212 = scmp.lt.s32.totalorder %s16, 1
      %s213 = scalar_select %p212, %s16, 1
      %s214 = smul.addr %s213, 4
      %s215 = scalar_lea.vmem %s0, %s214
      %p216 = scmp.lt.s32.totalorder %s16, 1
      %s217 = scalar_select %p216, %s16, 1
      %s218 = smul.addr %s217, 8
      %s219 = scalar_lea.vmem %s5, %s218
      %v225 = vld [vmem:[%s215] sm:$0xf]
      %v226 = vld [vmem:[%s1] sm:$0xf]
      %v227 = vld [vmem:[%s1 + $0x4] sm:$0xf]
      %v228 = vld [vmem:[%s1 + $0x8] sm:$0xf]
      %v229 = vld [vmem:[%s1 + $0xc] sm:$0xf]
      %v230 = vld [vmem:[%s1 + $0x10] sm:$0xf]
      %v231 = vld [vmem:[%s1 + $0x14] sm:$0xf]
      %v232 = vld [vmem:[%s1 + $0x18] sm:$0xf]
      %v233 = vld [vmem:[%s1 + $0x1c] sm:$0xf]
      %v234 = vld [vmem:[%s1 + $0x20] sm:$0xf]
      %v235 = vld [vmem:[%s1 + $0x24] sm:$0xf]
      %v236 = vld [vmem:[%s1 + $0x28] sm:$0xf]
      %v237 = vld [vmem:[%s1 + $0x2c] sm:$0xf]
      %v238 = vld [vmem:[%s1 + $0x30] sm:$0xf]
      %v239 = vld [vmem:[%s1 + $0x34] sm:$0xf]
      %v240 = vld [vmem:[%s1 + $0x38] sm:$0xf]
      %v241 = vld [vmem:[%s1 + $0x3c] sm:$0xf]
      %v258 = vunpack.c.l.b16 %v226
      %v259 = vunpack.c.l.b16 %v227
      %v260 = vunpack.c.l.b16 %v228
      %v261 = vunpack.c.l.b16 %v229
      %v262 = vunpack.c.l.b16 %v230
      %v263 = vunpack.c.l.b16 %v231
      %v264 = vunpack.c.l.b16 %v232
      %v265 = vunpack.c.l.b16 %v233
      %v266 = vunpack.c.l.b16 %v234
      %v267 = vunpack.c.l.b16 %v235
      %v268 = vunpack.c.l.b16 %v236
      %v269 = vunpack.c.l.b16 %v237
      %v270 = vunpack.c.l.b16 %v238
      %v271 = vunpack.c.l.b16 %v239
      %v272 = vunpack.c.l.b16 %v240
      %v273 = vunpack.c.l.b16 %v241
      %v274 = vpack.c.b16 %v259, %v258
      %v275 = vpack.c.b16 %v261, %v260
      %v276 = vpack.c.b16 %v263, %v262
      %v277 = vpack.c.b16 %v265, %v264
      %v278 = vpack.c.b16 %v267, %v266
      %v279 = vpack.c.b16 %v269, %v268
      %v280 = vpack.c.b16 %v271, %v270
      %v281 = vpack.c.b16 %v273, %v272
      %290 = vmatprep.subr.bf16.mxu0 0
      %291 = vmatpush1.bf16.msra.mxu0 %v274
      %292 = vmatprep.subr.bf16.mxu0 0
      %293 = vmatpush1.bf16.msra.mxu0 %v275
      %294 = vmatprep.subr.bf16.mxu0 0
      %295 = vmatpush1.bf16.msra.mxu0 %v276
      %296 = vmatprep.subr.bf16.mxu0 0
      %297 = vmatpush1.bf16.msra.mxu0 %v277
      %298 = vmatprep.subr.bf16.mxu0 0
      %299 = vmatpush1.bf16.msra.mxu0 %v278
      %300 = vmatprep.subr.bf16.mxu0 0
      %301 = vmatpush1.bf16.msra.mxu0 %v279
      %302 = vmatprep.subr.bf16.mxu0 0
      %303 = vmatpush1.bf16.msra.mxu0 %v280
      %304 = vmatprep.subr.bf16.mxu0 0
      %305 = vmatpush1.bf16.msra.mxu0 %v281
      %306 = vmatprep.subr.bf16.mxu0 0
      %307 = vmatpush1.bf16.msra.mxu0 0
      %308 = vmatprep.subr.bf16.mxu0 0
      %309 = vmatpush1.bf16.msra.mxu0 0
      %310 = vmatprep.subr.bf16.mxu0 0
      %311 = vmatpush1.bf16.msra.mxu0 0
      %312 = vmatprep.subr.bf16.mxu0 0
      %313 = vmatpush1.bf16.msra.mxu0 0
      %314 = vmatprep.subr.bf16.mxu0 0
      %315 = vmatpush1.bf16.msra.mxu0 0
      %316 = vmatprep.subr.bf16.mxu0 0
      %317 = vmatpush1.bf16.msra.mxu0 0
      %318 = vmatprep.subr.bf16.mxu0 0
      %319 = vmatpush1.bf16.msra.mxu0 0
      %320 = vmatprep.subr.bf16.mxu0 0
      %321 = vmatpush1.bf16.msra.mxu0 0
      %322 = vmatprep.mubr.bf16.mxu0 0
      %323 = vmatmul.mubr.bf16.gmra.mrb[0].mxu0 %v225
      %v324 = vpop.f32.mrb[0].mxu0
      %v325 = vadd.f32 0.0, %v324
      %v326 = vpop.f32.mrb[0].mxu0
      %v327 = vpop.f32.mrb[0].mxu0
      %v328 = vpop.f32.mrb[0].mxu0
      %329 = vdwg.mxu0
      %v330 = vpack.c.bf16 %v325, %v325
      %v331 = vld [vmem:[%s2] sm:$0x1]
      %v333 = vpack.i.b16 %v331, %v331
      %v335 = vlaneseq
      %v336 = vshrl.u32 %v335, 7
      %v337 = vsub.s32 0, %v336
      %v338 = vrot.slane %v333, %v337
      %v339 = vadd.bf16 %v330, %v338
      %v340 = vmul.bf16 %v339, 1056980736
      %v341 = vmul.bf16 %v339, %v339
      %v342 = vmul.bf16 %v341, %v339
      %v343 = vmul.bf16 %v342, 1027030327
      %v344 = vadd.bf16 %v339, %v343
      %v345 = vmul.bf16 %v344, 1061961548
      %v346 = vtanh.bf16.pop %v345
      %v347 = vadd.bf16 %v346, 1065369472
      %v348 = vmul.bf16 %v340, %v347
      %v349 = vld [vmem:[%s3] sm:$0xf]
      %v350 = vld [vmem:[%s3 + $0x4] sm:$0xf]
      %v351 = vld [vmem:[%s3 + $0x8] sm:$0xf]
      %v352 = vld [vmem:[%s3 + $0xc] sm:$0xf]
      %v353 = vld [vmem:[%s3 + $0x10] sm:$0xf]
      %v354 = vld [vmem:[%s3 + $0x14] sm:$0xf]
      %v355 = vld [vmem:[%s3 + $0x18] sm:$0xf]
      %v356 = vld [vmem:[%s3 + $0x1c] sm:$0xf]
      %v357 = vld [vmem:[%s3 + $0x20] sm:$0xf]
      %v358 = vld [vmem:[%s3 + $0x24] sm:$0xf]
      %v359 = vld [vmem:[%s3 + $0x28] sm:$0xf]
      %v360 = vld [vmem:[%s3 + $0x2c] sm:$0xf]
      %v361 = vld [vmem:[%s3 + $0x30] sm:$0xf]
      %v362 = vld [vmem:[%s3 + $0x34] sm:$0xf]
      %v363 = vld [vmem:[%s3 + $0x38] sm:$0xf]
      %v364 = vld [vmem:[%s3 + $0x3c] sm:$0xf]
      %v365 = vld [vmem:[%s4] sm:$0x1]
      %v367 = vlaneseq
      %v368 = vshrl.u32 %v367, 7
      %v369 = vsub.s32 0, %v368
      %v370 = vrot.slane %v365, %v369
      %v388 = vunpack.c.l.b16 %v349
      %v389 = vunpack.c.l.b16 %v350
      %v390 = vunpack.c.l.b16 %v351
      %v391 = vunpack.c.l.b16 %v352
      %v392 = vunpack.c.l.b16 %v353
      %v393 = vunpack.c.l.b16 %v354
      %v394 = vunpack.c.l.b16 %v355
      %v395 = vunpack.c.l.b16 %v356
      %v396 = vunpack.c.l.b16 %v357
      %v397 = vunpack.c.l.b16 %v358
      %v398 = vunpack.c.l.b16 %v359
      %v399 = vunpack.c.l.b16 %v360
      %v400 = vunpack.c.l.b16 %v361
      %v401 = vunpack.c.l.b16 %v362
      %v402 = vunpack.c.l.b16 %v363
      %v403 = vunpack.c.l.b16 %v364
      %v404 = vpack.c.b16 %v389, %v388
      %v405 = vpack.c.b16 %v391, %v390
      %v406 = vpack.c.b16 %v393, %v392
      %v407 = vpack.c.b16 %v395, %v394
      %v408 = vpack.c.b16 %v397, %v396
      %v409 = vpack.c.b16 %v399, %v398
      %v410 = vpack.c.b16 %v401, %v400
      %v411 = vpack.c.b16 %v403, %v402
      %420 = vmatprep.subr.bf16.mxu0 0
      %421 = vmatpush1.bf16.msra.mxu0 %v404
      %422 = vmatprep.subr.bf16.mxu0 0
      %423 = vmatpush1.bf16.msra.mxu0 %v405
      %424 = vmatprep.subr.bf16.mxu0 0
      %425 = vmatpush1.bf16.msra.mxu0 %v406
      %426 = vmatprep.subr.bf16.mxu0 0
      %427 = vmatpush1.bf16.msra.mxu0 %v407
      %428 = vmatprep.subr.bf16.mxu0 0
      %429 = vmatpush1.bf16.msra.mxu0 %v408
      %430 = vmatprep.subr.bf16.mxu0 0
      %431 = vmatpush1.bf16.msra.mxu0 %v409
      %432 = vmatprep.subr.bf16.mxu0 0
      %433 = vmatpush1.bf16.msra.mxu0 %v410
      %434 = vmatprep.subr.bf16.mxu0 0
      %435 = vmatpush1.bf16.msra.mxu0 %v411
      %436 = vmatprep.subr.bf16.mxu0 0
      %437 = vmatpush1.bf16.msra.mxu0 0
      %438 = vmatprep.subr.bf16.mxu0 0
      %439 = vmatpush1.bf16.msra.mxu0 0
      %440 = vmatprep.subr.bf16.mxu0 0
      %441 = vmatpush1.bf16.msra.mxu0 0
      %442 = vmatprep.subr.bf16.mxu0 0
      %443 = vmatpush1.bf16.msra.mxu0 0
      %444 = vmatprep.subr.bf16.mxu0 0
      %445 = vmatpush1.bf16.msra.mxu0 0
      %446 = vmatprep.subr.bf16.mxu0 0
      %447 = vmatpush1.bf16.msra.mxu0 0
      %448 = vmatprep.subr.bf16.mxu0 0
      %449 = vmatpush1.bf16.msra.mxu0 0
      %450 = vmatprep.subr.bf16.mxu0 0
      %451 = vmatpush1.bf16.msra.mxu0 0
      %452 = vmatprep.mubr.bf16.mxu0 0
      %453 = vmatmul.mubr.bf16.gmra.mrb[0].mxu0 %v348
      %v454 = vpop.f32.mrb[0].mxu0
      %v455 = vadd.f32 %v370, %v454
      %v456 = vpop.f32.mrb[0].mxu0
      %v457 = vpop.f32.mrb[0].mxu0
      %v458 = vpop.f32.mrb[0].mxu0
      %459 = vdwg.mxu0
      %460 = vst [vmem:[%s219] sm:$0xff] %v455
      %p461 = scmp.lt.s32.totalorder %s16, 1
      %s462 = scalar_select %p461, %s16, 1
      %s463 = smul.addr %s462, 8
      %s464 = scalar_lea.vmem %s5, %s463
      // Predicated region
      $region41: #{mlp_pallas.1} parent=39 // pred_check
        %p465 = pneg %p144
      $region42: #{mlp_pallas.1} parent=39 // pred_check_branch
        %467 = sbr.rel (%p465) target = $region44
      $region43: #{mlp_pallas.1} parent=39 // pred_region
        _
      $region44: #{mlp_pallas.1} parent=39 // pred_fallthru
        _
    $region40: #{mlp_pallas.1} parent=5 // pred_fallthru
      _
    %p468 = scmp.le.s32.totalorder 2, %s11
    // Predicated region
    $region45: #{mlp_pallas.1} parent=5 // pred_check
      %p469 = pneg %p468
    $region46: #{mlp_pallas.1} parent=5 // pred_check_branch
      %471 = sbr.rel (%p469) target = $region48
    $region47: #{mlp_pallas.1} parent=5 // pred_region
      %s472 = ssub.s32 %s11, 2
      // Predicated region
      $region49: #{mlp_pallas.1} parent=47 // pred_check
        %p473 = pneg %p150
      $region50: #{mlp_pallas.1} parent=47 // pred_check_branch
        %475 = sbr.rel (%p473) target = $region52
      $region51: #{mlp_pallas.1} parent=47 // pred_region
        %p476 = scmp.lt.s32.totalorder %s17, 1
        %s477 = scalar_select %p476, %s17, 1
        %s478 = smul.addr %s477, 8
        %s479 = scalar_lea.vmem %s5, %s478
      $region52: #{mlp_pallas.1} parent=47 // pred_fallthru
        _
    $region48: #{mlp_pallas.1} parent=5 // pred_fallthru
      _
  $region6: #{mlp_pallas.1} parent=0 // loop_footer
    %s15 = sadd.s32 1, %s11
  $region7: #{mlp_pallas.1} parent=0 // loop_footer_branch
    %10 = sbr.rel target = $region3
  $region8: #{mlp_pallas.1} parent=0 // loop_exit
    _

</llo_original>
